<compile_context>
chip_gen: v5e
topology: v5e:2x2
jax: 0.10.0
libtpu: 0.0.40
codegen_flags: <defaults>
</compile_context>

<pallas_src>
import functools
import math

import jax
import jax.numpy as jnp
from jax.experimental import pallas as pl
from jax.experimental.pallas import tpu as pltpu

# TODO(synk): QueryFormer plan_model (and the frozen sql_model) are external
# encoders with no in-kernel equivalent; plan_emb is passed in precomputed and
# sql/log are unused by PlanModel.forward on the cross_model=None path.

NUM_TIME_STEPS = 7     # time_tran_emb = Linear(emb_dim * 7, emb_dim)
NUM_CLASSES = 12       # pred_label_concat / pred_opt_concat = Linear(2E, 12)
OUT_PAD = 128          # fused head output padded to a full lane tile
TILE_CAP = 1024        # max batch rows per grid step (VMEM-safe everywhere)


def _round_up(x, m):
    return ((x + m - 1) // m) * m


# ----------------------------- the fused kernel ------------------------------
def _plan_kernel(time_ref, plan_ref,
                 w1, b1, w2, b2, w3, b3,
                 wp, wt, bh,
                 out_ref):
    f32 = jnp.float32
    bf16 = jnp.bfloat16
    dot = functools.partial(jnp.dot, preferred_element_type=f32)
    relu = lambda x: jnp.maximum(x, 0.0)

    w1v, b1v = w1[...], b1[...]
    w2v, b2v = w2[...], b2[...]
    w3v, b3v = w3[...], b3[...]

    # Plan-head contribution + folded bias.  logits is a [bt, 128] f32
    # accumulator; columns 0:12 = label head, 12:24 = opt head, rest = pad.
    logits = dot(plan_ref[...], wp[...]) + bh[...]

    # TimeSeries MLP with the step axis folded into batch: time_ref is
    # step-major [7, bt, Tin]; every per-step [bt, E] embedding feeds the head
    # through the pre-folded (time_tran_emb o head) weight wt[s] — the PyTorch
    # flatten(start_dim=1) + Linear(7E, E) never materializes in-kernel.
    for s in range(NUM_TIME_STEPS):
        x = time_ref[s]                                        # [bt, Tin] bf16
        h = relu(dot(x, w1v) + b1v)                            # [bt, H] f32
        h = relu(dot(h.astype(bf16), w2v) + b2v)               # [bt, H]
        h = relu(dot(h.astype(bf16), w3v) + b3v)               # [bt, E]
        logits += dot(h.astype(bf16), wt[s])                   # [bt, 128]

    col = jax.lax.broadcasted_iota(jnp.int32, logits.shape, 1)
    sig = 1.0 / (1.0 + jnp.exp(-logits))                       # exact sigmoid
    out_ref[...] = jnp.where(col < NUM_CLASSES, sig, logits).astype(out_ref.dtype)


# ------------------------- offline weight preprocessing ----------------------
def prepare_weights(params):
    """Fuse + pad the two 12-wide heads into one [*, 128] head, fold
    time_tran_emb (Linear o Linear) into the time part of that head, and cast
    matmul weights to bfloat16.  Call ONCE at model-load time (not per step)."""
    (tw1, tb1, tw2, tb2, tw3, tb3, ttw, ttb, plw, plb, pow_w, pob) = params
    S = NUM_TIME_STEPS
    E = ttw.shape[1]
    bf16 = jnp.bfloat16

    wh = jnp.concatenate([plw, pow_w], axis=1)                 # [2E, 24]
    bhd = jnp.concatenate([plb, pob], axis=1)                  # [1, 24]
    wh = jnp.pad(wh, ((0, 0), (0, OUT_PAD - 2 * NUM_CLASSES)))
    bhd = jnp.pad(bhd, ((0, 0), (0, OUT_PAD - 2 * NUM_CLASSES)))

    wp = wh[:E, :]                                             # plan head  [E, 128]
    wt = (ttw @ wh[E:, :]).reshape(S, E, OUT_PAD)              # folded time [7, E, 128]
    bh = ttb @ wh[E:, :] + bhd                                 # folded bias [1, 128]

    return (tw1.astype(bf16), tb1,
            tw2.astype(bf16), tb2,
            tw3.astype(bf16), tb3,
            wp.astype(bf16), wt.astype(bf16), bh)


# --------------------------------- wrapper -----------------------------------
@jax.jit
def plan_model_forward(plan_emb, time_x, prep, sql=None, log=None):
    """plan_emb: [B, P, E] (QueryFormer output), time_x: [B, 7, Tin],
    prep: output of prepare_weights().  sql / log kept for signature parity
    with PlanModel.forward but unused on the cross_model=None path."""
    del sql, log
    B, S, Tin = time_x.shape
    E = plan_emb.shape[-1]
    assert S == NUM_TIME_STEPS

    plan0 = plan_emb[:, 0, :].astype(jnp.bfloat16)                    # [B, E]
    time_sm = jnp.transpose(time_x, (1, 0, 2)).astype(jnp.bfloat16)   # [7, B, Tin]

    # Balanced 16-aligned batch tiles: cap at TILE_CAP rows, force >=2 grid
    # steps for large B so v7x's 2 TensorCores both get work on the
    # "parallel" batch axis, and keep padding to at most one sublane group.
    n_tiles = max(pl.cdiv(B, TILE_CAP), 1)
    if B >= 128:
        n_tiles = max(n_tiles, 2)
    bt = _round_up(pl.cdiv(B, n_tiles), 16)       # 16: bf16 sublane packing
    B_pad = n_tiles * bt
    if B_pad != B:
        plan0 = jnp.pad(plan0, ((0, B_pad - B), (0, 0)))
        time_sm = jnp.pad(time_sm, ((0, 0), (0, B_pad - B), (0, 0)))

    # Grid-invariant weights: whole-array VMEM refs (single-buffered).
    weight_spec = pl.BlockSpec(memory_space=pltpu.MemorySpace.VMEM)
    in_specs = [
        pl.BlockSpec((NUM_TIME_STEPS, bt, Tin), lambda i: (0, i, 0)),
        pl.BlockSpec((bt, E), lambda i: (i, 0)),
    ] + [weight_spec] * len(prep)
    out_specs = pl.BlockSpec((bt, OUT_PAD), lambda i: (i, 0))

    H = prep[0].shape[1]
    flops_per_row = 2 * (NUM_TIME_STEPS * (Tin * H + H * H + H * E)
                         + E * OUT_PAD + NUM_TIME_STEPS * E * OUT_PAD)
    bytes_accessed = (2 * B_pad * (NUM_TIME_STEPS * Tin + E)          # bf16 in
                      + sum(int(w.size) * w.dtype.itemsize for w in prep)
                      + 2 * B_pad * OUT_PAD)                          # bf16 out
    cost = pl.CostEstimate(flops=int(B_pad * flops_per_row),
                           transcendentals=int(B_pad * OUT_PAD),
                           bytes_accessed=int(bytes_accessed))

    out = pl.pallas_call(
        _plan_kernel,
        out_shape=jax.ShapeDtypeStruct((B_pad, OUT_PAD), jnp.bfloat16),
        grid=(n_tiles,),
        in_specs=in_specs,
        out_specs=out_specs,
        compiler_params=pltpu.CompilerParams(
            dimension_semantics=("parallel",)),
        cost_estimate=cost,
    )(time_sm, plan0, *prep)

    pred_label = out[:B, :NUM_CLASSES].astype(jnp.float32)
    pred_opt = out[:B, NUM_CLASSES:2 * NUM_CLASSES].astype(jnp.float32)
    return pred_label, pred_opt


# ----------------------- deterministic parameter init ------------------------
def _xavier(key, fan_in, fan_out):
    bound = math.sqrt(6.0 / (fan_in + fan_out))
    # stored as [in, out] (PyTorch weight transposed)
    return jax.random.uniform(key, (fan_in, fan_out), jnp.float32,
                              minval=-bound, maxval=bound)


def _bias(key, fan_in, fan_out):
    bound = 1.0 / math.sqrt(fan_in)
    return jax.random.uniform(key, (1, fan_out), jnp.float32,
                              minval=-bound, maxval=bound)


def make_params(key, t_input_dim, t_hidden_dim, emb_dim):
    dims = [
        (t_input_dim, t_hidden_dim),              # time ll_1
        (t_hidden_dim, t_hidden_dim),             # time ll_2
        (t_hidden_dim, emb_dim),                  # time cls
        (emb_dim * NUM_TIME_STEPS, emb_dim),      # time_tran_emb
        (emb_dim * 2, NUM_CLASSES),               # pred_label_concat
        (emb_dim * 2, NUM_CLASSES),               # pred_opt_concat
    ]
    params = []
    keys = jax.random.split(key, 2 * len(dims))
    for i, (fi, fo) in enumerate(dims):
        params.append(_xavier(keys[2 * i], fi, fo))
        params.append(_bias(keys[2 * i + 1], fi, fo))
    return tuple(params)


# ------------------------------ pure-JAX reference ---------------------------
def reference_forward(plan_emb, time_x, params):
    (tw1, tb1, tw2, tb2, tw3, tb3, ttw, ttb, plw, plb, pow_w, pob) = params
    relu = jax.nn.relu
    t = relu(time_x @ tw1 + tb1)
    t = relu(t @ tw2 + tb2)
    t = relu(t @ tw3 + tb3)                       # [B, 7, E]
    time_e = t.reshape(t.shape[0], -1) @ ttw + ttb
    plan0 = plan_emb[:, 0, :]
    emb = jnp.concatenate([plan0, time_e], axis=1)
    return jax.nn.sigmoid(emb @ plw + plb), emb @ pow_w + pob


if __name__ == "__main__":
    # small shapes consistent with the module
    B = 8           # batch
    P = 4           # plan "node" dim (only node 0 used)
    EMB = 32        # emb_dim
    T_IN, T_HID = 16, 32

    key = jax.random.PRNGKey(0)
    k_plan, k_time, k_par = jax.random.split(key, 3)

    plan_emb = jax.random.normal(k_plan, (B, P, EMB), jnp.float32)
    time_x = jax.random.normal(k_time, (B, NUM_TIME_STEPS, T_IN), jnp.float32)
    params = make_params(k_par, T_IN, T_HID, EMB)

    prep = prepare_weights(params)          # hoisted: built once, reused
    pred_label, pred_opt = plan_model_forward(plan_emb, time_x, prep)
    jax.block_until_ready((pred_label, pred_opt))

    ref_label, ref_opt = reference_forward(plan_emb, time_x, params)
    assert pred_label.shape == (B, NUM_CLASSES)
    assert pred_opt.shape == (B, NUM_CLASSES)
    # bf16 matmul operands / bf16 output + offline weight folding change the
    # rounding vs the f32 reference; tolerances reflect that (not a bug).
    assert jnp.allclose(pred_label, ref_label, atol=5e-2, rtol=5e-2)
    assert jnp.allclose(pred_opt, ref_opt, atol=5e-2, rtol=5e-2)
    print("KERNEL_OK")
</pallas_src>

<mosaic_0001>
module attributes {stable_mosaic.version = 11 : i64} {
  func.func @_plan_kernel(%arg0: i32, %arg1: memref<7x16x16xbf16, #tpu.memory_space<vmem>>, %arg2: memref<16x32xbf16, #tpu.memory_space<vmem>>, %arg3: memref<16x32xbf16, #tpu.memory_space<vmem>>, %arg4: memref<1x32xf32, #tpu.memory_space<vmem>>, %arg5: memref<32x32xbf16, #tpu.memory_space<vmem>>, %arg6: memref<1x32xf32, #tpu.memory_space<vmem>>, %arg7: memref<32x32xbf16, #tpu.memory_space<vmem>>, %arg8: memref<1x32xf32, #tpu.memory_space<vmem>>, %arg9: memref<32x128xbf16, #tpu.memory_space<vmem>>, %arg10: memref<7x32x128xbf16, #tpu.memory_space<vmem>>, %arg11: memref<1x128xf32, #tpu.memory_space<vmem>>, %arg12: memref<16x128xbf16, #tpu.memory_space<vmem>>) attributes {dimension_semantics = [#tpu.dimension_semantics<parallel>], iteration_bounds = array<i64: 1>, scalar_prefetch = 0 : i64, scratch_operands = 0 : i64, tpu.core_type = #tpu.core_type<tc>, window_params = [{transform_indices = @transform_0, window_bounds = array<i64: 7, 16, 16>}, {transform_indices = @transform_1, window_bounds = array<i64: 16, 32>}, {pipeline_mode = #tpu.pipeline_mode<synchronous>, transform_indices = @transform_2, window_bounds = array<i64: 16, 32>}, {pipeline_mode = #tpu.pipeline_mode<synchronous>, transform_indices = @transform_3, window_bounds = array<i64: 1, 32>}, {pipeline_mode = #tpu.pipeline_mode<synchronous>, transform_indices = @transform_4, window_bounds = array<i64: 32, 32>}, {pipeline_mode = #tpu.pipeline_mode<synchronous>, transform_indices = @transform_5, window_bounds = array<i64: 1, 32>}, {pipeline_mode = #tpu.pipeline_mode<synchronous>, transform_indices = @transform_6, window_bounds = array<i64: 32, 32>}, {pipeline_mode = #tpu.pipeline_mode<synchronous>, transform_indices = @transform_7, window_bounds = array<i64: 1, 32>}, {pipeline_mode = #tpu.pipeline_mode<synchronous>, transform_indices = @transform_8, window_bounds = array<i64: 32, 128>}, {pipeline_mode = #tpu.pipeline_mode<synchronous>, transform_indices = @transform_9, window_bounds = array<i64: 7, 32, 128>}, {pipeline_mode = #tpu.pipeline_mode<synchronous>, transform_indices = @transform_10, window_bounds = array<i64: 1, 128>}, {transform_indices = @transform_11, window_bounds = array<i64: 16, 128>}]} {
    %c0 = arith.constant 0 : index
    %c0_0 = arith.constant 0 : index
    %0 = vector.load %arg3[%c0, %c0_0] : memref<16x32xbf16, #tpu.memory_space<vmem>>, vector<16x32xbf16>
    %c0_1 = arith.constant 0 : index
    %c0_2 = arith.constant 0 : index
    %1 = vector.load %arg4[%c0_1, %c0_2] : memref<1x32xf32, #tpu.memory_space<vmem>>, vector<1x32xf32>
    %c0_3 = arith.constant 0 : index
    %c0_4 = arith.constant 0 : index
    %2 = vector.load %arg5[%c0_3, %c0_4] : memref<32x32xbf16, #tpu.memory_space<vmem>>, vector<32x32xbf16>
    %c0_5 = arith.constant 0 : index
    %c0_6 = arith.constant 0 : index
    %3 = vector.load %arg6[%c0_5, %c0_6] : memref<1x32xf32, #tpu.memory_space<vmem>>, vector<1x32xf32>
    %c0_7 = arith.constant 0 : index
    %c0_8 = arith.constant 0 : index
    %4 = vector.load %arg7[%c0_7, %c0_8] : memref<32x32xbf16, #tpu.memory_space<vmem>>, vector<32x32xbf16>
    %c0_9 = arith.constant 0 : index
    %c0_10 = arith.constant 0 : index
    %5 = vector.load %arg8[%c0_9, %c0_10] : memref<1x32xf32, #tpu.memory_space<vmem>>, vector<1x32xf32>
    %c0_11 = arith.constant 0 : index
    %c0_12 = arith.constant 0 : index
    %6 = vector.load %arg2[%c0_11, %c0_12] : memref<16x32xbf16, #tpu.memory_space<vmem>>, vector<16x32xbf16>
    %c0_13 = arith.constant 0 : index
    %c0_14 = arith.constant 0 : index
    %7 = vector.load %arg9[%c0_13, %c0_14] : memref<32x128xbf16, #tpu.memory_space<vmem>>, vector<32x128xbf16>
    %cst = arith.constant dense<0.000000e+00> : vector<16x128xf32>
    %8 = tpu.matmul %6, %7, %cst {dimension_numbers = #tpu.dot_dimension_numbers<[1], [0], [0], [1], [0, 0, 1, 1], [], []>} : vector<16x32xbf16>, vector<32x128xbf16>, vector<16x128xf32> -> vector<16x128xf32>
    %c0_15 = arith.constant 0 : index
    %c0_16 = arith.constant 0 : index
    %9 = vector.load %arg11[%c0_15, %c0_16] : memref<1x128xf32, #tpu.memory_space<vmem>>, vector<1x128xf32>
    %10 = vector.broadcast %9 : vector<1x128xf32> to vector<16x128xf32>
    %11 = arith.addf %8, %10 : vector<16x128xf32>
    %c0_17 = arith.constant 0 : index
    %c0_18 = arith.constant 0 : index
    %c0_19 = arith.constant 0 : index
    %12 = vector.load %arg1[%c0_17, %c0_18, %c0_19] : memref<7x16x16xbf16, #tpu.memory_space<vmem>>, vector<1x16x16xbf16>
    %13 = vector.shape_cast %12 : vector<1x16x16xbf16> to vector<16x16xbf16>
    %cst_20 = arith.constant dense<0.000000e+00> : vector<16x32xf32>
    %14 = tpu.matmul %13, %0, %cst_20 {dimension_numbers = #tpu.dot_dimension_numbers<[1], [0], [0], [1], [0, 0, 1, 1], [], []>} : vector<16x16xbf16>, vector<16x32xbf16>, vector<16x32xf32> -> vector<16x32xf32>
    %15 = vector.broadcast %1 : vector<1x32xf32> to vector<16x32xf32>
    %16 = arith.addf %14, %15 : vector<16x32xf32>
    %cst_21 = arith.constant 0.000000e+00 : f32
    %17 = vector.broadcast %cst_21 : f32 to vector<16x32xf32>
    %18 = arith.maximumf %16, %17 : vector<16x32xf32>
    %19 = arith.truncf %18 : vector<16x32xf32> to vector<16x32xbf16>
    %cst_22 = arith.constant dense<0.000000e+00> : vector<16x32xf32>
    %20 = tpu.matmul %19, %2, %cst_22 {dimension_numbers = #tpu.dot_dimension_numbers<[1], [0], [0], [1], [0, 0, 1, 1], [], []>} : vector<16x32xbf16>, vector<32x32xbf16>, vector<16x32xf32> -> vector<16x32xf32>
    %21 = vector.broadcast %3 : vector<1x32xf32> to vector<16x32xf32>
    %22 = arith.addf %20, %21 : vector<16x32xf32>
    %cst_23 = arith.constant 0.000000e+00 : f32
    %23 = vector.broadcast %cst_23 : f32 to vector<16x32xf32>
    %24 = arith.maximumf %22, %23 : vector<16x32xf32>
    %25 = arith.truncf %24 : vector<16x32xf32> to vector<16x32xbf16>
    %cst_24 = arith.constant dense<0.000000e+00> : vector<16x32xf32>
    %26 = tpu.matmul %25, %4, %cst_24 {dimension_numbers = #tpu.dot_dimension_numbers<[1], [0], [0], [1], [0, 0, 1, 1], [], []>} : vector<16x32xbf16>, vector<32x32xbf16>, vector<16x32xf32> -> vector<16x32xf32>
    %27 = vector.broadcast %5 : vector<1x32xf32> to vector<16x32xf32>
    %28 = arith.addf %26, %27 : vector<16x32xf32>
    %cst_25 = arith.constant 0.000000e+00 : f32
    %29 = vector.broadcast %cst_25 : f32 to vector<16x32xf32>
    %30 = arith.maximumf %28, %29 : vector<16x32xf32>
    %31 = arith.truncf %30 : vector<16x32xf32> to vector<16x32xbf16>
    %c0_26 = arith.constant 0 : index
    %c0_27 = arith.constant 0 : index
    %c0_28 = arith.constant 0 : index
    %32 = vector.load %arg10[%c0_26, %c0_27, %c0_28] : memref<7x32x128xbf16, #tpu.memory_space<vmem>>, vector<1x32x128xbf16>
    %33 = vector.shape_cast %32 : vector<1x32x128xbf16> to vector<32x128xbf16>
    %cst_29 = arith.constant dense<0.000000e+00> : vector<16x128xf32>
    %34 = tpu.matmul %31, %33, %cst_29 {dimension_numbers = #tpu.dot_dimension_numbers<[1], [0], [0], [1], [0, 0, 1, 1], [], []>} : vector<16x32xbf16>, vector<32x128xbf16>, vector<16x128xf32> -> vector<16x128xf32>
    %35 = arith.addf %11, %34 : vector<16x128xf32>
    %c1 = arith.constant 1 : index
    %c0_30 = arith.constant 0 : index
    %c0_31 = arith.constant 0 : index
    %36 = vector.load %arg1[%c1, %c0_30, %c0_31] : memref<7x16x16xbf16, #tpu.memory_space<vmem>>, vector<1x16x16xbf16>
    %37 = vector.shape_cast %36 : vector<1x16x16xbf16> to vector<16x16xbf16>
    %cst_32 = arith.constant dense<0.000000e+00> : vector<16x32xf32>
    %38 = tpu.matmul %37, %0, %cst_32 {dimension_numbers = #tpu.dot_dimension_numbers<[1], [0], [0], [1], [0, 0, 1, 1], [], []>} : vector<16x16xbf16>, vector<16x32xbf16>, vector<16x32xf32> -> vector<16x32xf32>
    %39 = vector.broadcast %1 : vector<1x32xf32> to vector<16x32xf32>
    %40 = arith.addf %38, %39 : vector<16x32xf32>
    %cst_33 = arith.constant 0.000000e+00 : f32
    %41 = vector.broadcast %cst_33 : f32 to vector<16x32xf32>
    %42 = arith.maximumf %40, %41 : vector<16x32xf32>
    %43 = arith.truncf %42 : vector<16x32xf32> to vector<16x32xbf16>
    %cst_34 = arith.constant dense<0.000000e+00> : vector<16x32xf32>
    %44 = tpu.matmul %43, %2, %cst_34 {dimension_numbers = #tpu.dot_dimension_numbers<[1], [0], [0], [1], [0, 0, 1, 1], [], []>} : vector<16x32xbf16>, vector<32x32xbf16>, vector<16x32xf32> -> vector<16x32xf32>
    %45 = vector.broadcast %3 : vector<1x32xf32> to vector<16x32xf32>
    %46 = arith.addf %44, %45 : vector<16x32xf32>
    %cst_35 = arith.constant 0.000000e+00 : f32
    %47 = vector.broadcast %cst_35 : f32 to vector<16x32xf32>
    %48 = arith.maximumf %46, %47 : vector<16x32xf32>
    %49 = arith.truncf %48 : vector<16x32xf32> to vector<16x32xbf16>
    %cst_36 = arith.constant dense<0.000000e+00> : vector<16x32xf32>
    %50 = tpu.matmul %49, %4, %cst_36 {dimension_numbers = #tpu.dot_dimension_numbers<[1], [0], [0], [1], [0, 0, 1, 1], [], []>} : vector<16x32xbf16>, vector<32x32xbf16>, vector<16x32xf32> -> vector<16x32xf32>
    %51 = vector.broadcast %5 : vector<1x32xf32> to vector<16x32xf32>
    %52 = arith.addf %50, %51 : vector<16x32xf32>
    %cst_37 = arith.constant 0.000000e+00 : f32
    %53 = vector.broadcast %cst_37 : f32 to vector<16x32xf32>
    %54 = arith.maximumf %52, %53 : vector<16x32xf32>
    %55 = arith.truncf %54 : vector<16x32xf32> to vector<16x32xbf16>
    %c1_38 = arith.constant 1 : index
    %c0_39 = arith.constant 0 : index
    %c0_40 = arith.constant 0 : index
    %56 = vector.load %arg10[%c1_38, %c0_39, %c0_40] : memref<7x32x128xbf16, #tpu.memory_space<vmem>>, vector<1x32x128xbf16>
    %57 = vector.shape_cast %56 : vector<1x32x128xbf16> to vector<32x128xbf16>
    %cst_41 = arith.constant dense<0.000000e+00> : vector<16x128xf32>
    %58 = tpu.matmul %55, %57, %cst_41 {dimension_numbers = #tpu.dot_dimension_numbers<[1], [0], [0], [1], [0, 0, 1, 1], [], []>} : vector<16x32xbf16>, vector<32x128xbf16>, vector<16x128xf32> -> vector<16x128xf32>
    %59 = arith.addf %35, %58 : vector<16x128xf32>
    %c2 = arith.constant 2 : index
    %c0_42 = arith.constant 0 : index
    %c0_43 = arith.constant 0 : index
    %60 = vector.load %arg1[%c2, %c0_42, %c0_43] : memref<7x16x16xbf16, #tpu.memory_space<vmem>>, vector<1x16x16xbf16>
    %61 = vector.shape_cast %60 : vector<1x16x16xbf16> to vector<16x16xbf16>
    %cst_44 = arith.constant dense<0.000000e+00> : vector<16x32xf32>
    %62 = tpu.matmul %61, %0, %cst_44 {dimension_numbers = #tpu.dot_dimension_numbers<[1], [0], [0], [1], [0, 0, 1, 1], [], []>} : vector<16x16xbf16>, vector<16x32xbf16>, vector<16x32xf32> -> vector<16x32xf32>
    %63 = vector.broadcast %1 : vector<1x32xf32> to vector<16x32xf32>
    %64 = arith.addf %62, %63 : vector<16x32xf32>
    %cst_45 = arith.constant 0.000000e+00 : f32
    %65 = vector.broadcast %cst_45 : f32 to vector<16x32xf32>
    %66 = arith.maximumf %64, %65 : vector<16x32xf32>
    %67 = arith.truncf %66 : vector<16x32xf32> to vector<16x32xbf16>
    %cst_46 = arith.constant dense<0.000000e+00> : vector<16x32xf32>
    %68 = tpu.matmul %67, %2, %cst_46 {dimension_numbers = #tpu.dot_dimension_numbers<[1], [0], [0], [1], [0, 0, 1, 1], [], []>} : vector<16x32xbf16>, vector<32x32xbf16>, vector<16x32xf32> -> vector<16x32xf32>
    %69 = vector.broadcast %3 : vector<1x32xf32> to vector<16x32xf32>
    %70 = arith.addf %68, %69 : vector<16x32xf32>
    %cst_47 = arith.constant 0.000000e+00 : f32
    %71 = vector.broadcast %cst_47 : f32 to vector<16x32xf32>
    %72 = arith.maximumf %70, %71 : vector<16x32xf32>
    %73 = arith.truncf %72 : vector<16x32xf32> to vector<16x32xbf16>
    %cst_48 = arith.constant dense<0.000000e+00> : vector<16x32xf32>
    %74 = tpu.matmul %73, %4, %cst_48 {dimension_numbers = #tpu.dot_dimension_numbers<[1], [0], [0], [1], [0, 0, 1, 1], [], []>} : vector<16x32xbf16>, vector<32x32xbf16>, vector<16x32xf32> -> vector<16x32xf32>
    %75 = vector.broadcast %5 : vector<1x32xf32> to vector<16x32xf32>
    %76 = arith.addf %74, %75 : vector<16x32xf32>
    %cst_49 = arith.constant 0.000000e+00 : f32
    %77 = vector.broadcast %cst_49 : f32 to vector<16x32xf32>
    %78 = arith.maximumf %76, %77 : vector<16x32xf32>
    %79 = arith.truncf %78 : vector<16x32xf32> to vector<16x32xbf16>
    %c2_50 = arith.constant 2 : index
    %c0_51 = arith.constant 0 : index
    %c0_52 = arith.constant 0 : index
    %80 = vector.load %arg10[%c2_50, %c0_51, %c0_52] : memref<7x32x128xbf16, #tpu.memory_space<vmem>>, vector<1x32x128xbf16>
    %81 = vector.shape_cast %80 : vector<1x32x128xbf16> to vector<32x128xbf16>
    %cst_53 = arith.constant dense<0.000000e+00> : vector<16x128xf32>
    %82 = tpu.matmul %79, %81, %cst_53 {dimension_numbers = #tpu.dot_dimension_numbers<[1], [0], [0], [1], [0, 0, 1, 1], [], []>} : vector<16x32xbf16>, vector<32x128xbf16>, vector<16x128xf32> -> vector<16x128xf32>
    %83 = arith.addf %59, %82 : vector<16x128xf32>
    %c3 = arith.constant 3 : index
    %c0_54 = arith.constant 0 : index
    %c0_55 = arith.constant 0 : index
    %84 = vector.load %arg1[%c3, %c0_54, %c0_55] : memref<7x16x16xbf16, #tpu.memory_space<vmem>>, vector<1x16x16xbf16>
    %85 = vector.shape_cast %84 : vector<1x16x16xbf16> to vector<16x16xbf16>
    %cst_56 = arith.constant dense<0.000000e+00> : vector<16x32xf32>
    %86 = tpu.matmul %85, %0, %cst_56 {dimension_numbers = #tpu.dot_dimension_numbers<[1], [0], [0], [1], [0, 0, 1, 1], [], []>} : vector<16x16xbf16>, vector<16x32xbf16>, vector<16x32xf32> -> vector<16x32xf32>
    %87 = vector.broadcast %1 : vector<1x32xf32> to vector<16x32xf32>
    %88 = arith.addf %86, %87 : vector<16x32xf32>
    %cst_57 = arith.constant 0.000000e+00 : f32
    %89 = vector.broadcast %cst_57 : f32 to vector<16x32xf32>
    %90 = arith.maximumf %88, %89 : vector<16x32xf32>
    %91 = arith.truncf %90 : vector<16x32xf32> to vector<16x32xbf16>
    %cst_58 = arith.constant dense<0.000000e+00> : vector<16x32xf32>
    %92 = tpu.matmul %91, %2, %cst_58 {dimension_numbers = #tpu.dot_dimension_numbers<[1], [0], [0], [1], [0, 0, 1, 1], [], []>} : vector<16x32xbf16>, vector<32x32xbf16>, vector<16x32xf32> -> vector<16x32xf32>
    %93 = vector.broadcast %3 : vector<1x32xf32> to vector<16x32xf32>
    %94 = arith.addf %92, %93 : vector<16x32xf32>
    %cst_59 = arith.constant 0.000000e+00 : f32
    %95 = vector.broadcast %cst_59 : f32 to vector<16x32xf32>
    %96 = arith.maximumf %94, %95 : vector<16x32xf32>
    %97 = arith.truncf %96 : vector<16x32xf32> to vector<16x32xbf16>
    %cst_60 = arith.constant dense<0.000000e+00> : vector<16x32xf32>
    %98 = tpu.matmul %97, %4, %cst_60 {dimension_numbers = #tpu.dot_dimension_numbers<[1], [0], [0], [1], [0, 0, 1, 1], [], []>} : vector<16x32xbf16>, vector<32x32xbf16>, vector<16x32xf32> -> vector<16x32xf32>
    %99 = vector.broadcast %5 : vector<1x32xf32> to vector<16x32xf32>
    %100 = arith.addf %98, %99 : vector<16x32xf32>
    %cst_61 = arith.constant 0.000000e+00 : f32
    %101 = vector.broadcast %cst_61 : f32 to vector<16x32xf32>
    %102 = arith.maximumf %100, %101 : vector<16x32xf32>
    %103 = arith.truncf %102 : vector<16x32xf32> to vector<16x32xbf16>
    %c3_62 = arith.constant 3 : index
    %c0_63 = arith.constant 0 : index
    %c0_64 = arith.constant 0 : index
    %104 = vector.load %arg10[%c3_62, %c0_63, %c0_64] : memref<7x32x128xbf16, #tpu.memory_space<vmem>>, vector<1x32x128xbf16>
    %105 = vector.shape_cast %104 : vector<1x32x128xbf16> to vector<32x128xbf16>
    %cst_65 = arith.constant dense<0.000000e+00> : vector<16x128xf32>
    %106 = tpu.matmul %103, %105, %cst_65 {dimension_numbers = #tpu.dot_dimension_numbers<[1], [0], [0], [1], [0, 0, 1, 1], [], []>} : vector<16x32xbf16>, vector<32x128xbf16>, vector<16x128xf32> -> vector<16x128xf32>
    %107 = arith.addf %83, %106 : vector<16x128xf32>
    %c4 = arith.constant 4 : index
    %c0_66 = arith.constant 0 : index
    %c0_67 = arith.constant 0 : index
    %108 = vector.load %arg1[%c4, %c0_66, %c0_67] : memref<7x16x16xbf16, #tpu.memory_space<vmem>>, vector<1x16x16xbf16>
    %109 = vector.shape_cast %108 : vector<1x16x16xbf16> to vector<16x16xbf16>
    %cst_68 = arith.constant dense<0.000000e+00> : vector<16x32xf32>
    %110 = tpu.matmul %109, %0, %cst_68 {dimension_numbers = #tpu.dot_dimension_numbers<[1], [0], [0], [1], [0, 0, 1, 1], [], []>} : vector<16x16xbf16>, vector<16x32xbf16>, vector<16x32xf32> -> vector<16x32xf32>
    %111 = vector.broadcast %1 : vector<1x32xf32> to vector<16x32xf32>
    %112 = arith.addf %110, %111 : vector<16x32xf32>
    %cst_69 = arith.constant 0.000000e+00 : f32
    %113 = vector.broadcast %cst_69 : f32 to vector<16x32xf32>
    %114 = arith.maximumf %112, %113 : vector<16x32xf32>
    %115 = arith.truncf %114 : vector<16x32xf32> to vector<16x32xbf16>
    %cst_70 = arith.constant dense<0.000000e+00> : vector<16x32xf32>
    %116 = tpu.matmul %115, %2, %cst_70 {dimension_numbers = #tpu.dot_dimension_numbers<[1], [0], [0], [1], [0, 0, 1, 1], [], []>} : vector<16x32xbf16>, vector<32x32xbf16>, vector<16x32xf32> -> vector<16x32xf32>
    %117 = vector.broadcast %3 : vector<1x32xf32> to vector<16x32xf32>
    %118 = arith.addf %116, %117 : vector<16x32xf32>
    %cst_71 = arith.constant 0.000000e+00 : f32
    %119 = vector.broadcast %cst_71 : f32 to vector<16x32xf32>
    %120 = arith.maximumf %118, %119 : vector<16x32xf32>
    %121 = arith.truncf %120 : vector<16x32xf32> to vector<16x32xbf16>
    %cst_72 = arith.constant dense<0.000000e+00> : vector<16x32xf32>
    %122 = tpu.matmul %121, %4, %cst_72 {dimension_numbers = #tpu.dot_dimension_numbers<[1], [0], [0], [1], [0, 0, 1, 1], [], []>} : vector<16x32xbf16>, vector<32x32xbf16>, vector<16x32xf32> -> vector<16x32xf32>
    %123 = vector.broadcast %5 : vector<1x32xf32> to vector<16x32xf32>
    %124 = arith.addf %122, %123 : vector<16x32xf32>
    %cst_73 = arith.constant 0.000000e+00 : f32
    %125 = vector.broadcast %cst_73 : f32 to vector<16x32xf32>
    %126 = arith.maximumf %124, %125 : vector<16x32xf32>
    %127 = arith.truncf %126 : vector<16x32xf32> to vector<16x32xbf16>
    %c4_74 = arith.constant 4 : index
    %c0_75 = arith.constant 0 : index
    %c0_76 = arith.constant 0 : index
    %128 = vector.load %arg10[%c4_74, %c0_75, %c0_76] : memref<7x32x128xbf16, #tpu.memory_space<vmem>>, vector<1x32x128xbf16>
    %129 = vector.shape_cast %128 : vector<1x32x128xbf16> to vector<32x128xbf16>
    %cst_77 = arith.constant dense<0.000000e+00> : vector<16x128xf32>
    %130 = tpu.matmul %127, %129, %cst_77 {dimension_numbers = #tpu.dot_dimension_numbers<[1], [0], [0], [1], [0, 0, 1, 1], [], []>} : vector<16x32xbf16>, vector<32x128xbf16>, vector<16x128xf32> -> vector<16x128xf32>
    %131 = arith.addf %107, %130 : vector<16x128xf32>
    %c5 = arith.constant 5 : index
    %c0_78 = arith.constant 0 : index
    %c0_79 = arith.constant 0 : index
    %132 = vector.load %arg1[%c5, %c0_78, %c0_79] : memref<7x16x16xbf16, #tpu.memory_space<vmem>>, vector<1x16x16xbf16>
    %133 = vector.shape_cast %132 : vector<1x16x16xbf16> to vector<16x16xbf16>
    %cst_80 = arith.constant dense<0.000000e+00> : vector<16x32xf32>
    %134 = tpu.matmul %133, %0, %cst_80 {dimension_numbers = #tpu.dot_dimension_numbers<[1], [0], [0], [1], [0, 0, 1, 1], [], []>} : vector<16x16xbf16>, vector<16x32xbf16>, vector<16x32xf32> -> vector<16x32xf32>
    %135 = vector.broadcast %1 : vector<1x32xf32> to vector<16x32xf32>
    %136 = arith.addf %134, %135 : vector<16x32xf32>
    %cst_81 = arith.constant 0.000000e+00 : f32
    %137 = vector.broadcast %cst_81 : f32 to vector<16x32xf32>
    %138 = arith.maximumf %136, %137 : vector<16x32xf32>
    %139 = arith.truncf %138 : vector<16x32xf32> to vector<16x32xbf16>
    %cst_82 = arith.constant dense<0.000000e+00> : vector<16x32xf32>
    %140 = tpu.matmul %139, %2, %cst_82 {dimension_numbers = #tpu.dot_dimension_numbers<[1], [0], [0], [1], [0, 0, 1, 1], [], []>} : vector<16x32xbf16>, vector<32x32xbf16>, vector<16x32xf32> -> vector<16x32xf32>
    %141 = vector.broadcast %3 : vector<1x32xf32> to vector<16x32xf32>
    %142 = arith.addf %140, %141 : vector<16x32xf32>
    %cst_83 = arith.constant 0.000000e+00 : f32
    %143 = vector.broadcast %cst_83 : f32 to vector<16x32xf32>
    %144 = arith.maximumf %142, %143 : vector<16x32xf32>
    %145 = arith.truncf %144 : vector<16x32xf32> to vector<16x32xbf16>
    %cst_84 = arith.constant dense<0.000000e+00> : vector<16x32xf32>
    %146 = tpu.matmul %145, %4, %cst_84 {dimension_numbers = #tpu.dot_dimension_numbers<[1], [0], [0], [1], [0, 0, 1, 1], [], []>} : vector<16x32xbf16>, vector<32x32xbf16>, vector<16x32xf32> -> vector<16x32xf32>
    %147 = vector.broadcast %5 : vector<1x32xf32> to vector<16x32xf32>
    %148 = arith.addf %146, %147 : vector<16x32xf32>
    %cst_85 = arith.constant 0.000000e+00 : f32
    %149 = vector.broadcast %cst_85 : f32 to vector<16x32xf32>
    %150 = arith.maximumf %148, %149 : vector<16x32xf32>
    %151 = arith.truncf %150 : vector<16x32xf32> to vector<16x32xbf16>
    %c5_86 = arith.constant 5 : index
    %c0_87 = arith.constant 0 : index
    %c0_88 = arith.constant 0 : index
    %152 = vector.load %arg10[%c5_86, %c0_87, %c0_88] : memref<7x32x128xbf16, #tpu.memory_space<vmem>>, vector<1x32x128xbf16>
    %153 = vector.shape_cast %152 : vector<1x32x128xbf16> to vector<32x128xbf16>
    %cst_89 = arith.constant dense<0.000000e+00> : vector<16x128xf32>
    %154 = tpu.matmul %151, %153, %cst_89 {dimension_numbers = #tpu.dot_dimension_numbers<[1], [0], [0], [1], [0, 0, 1, 1], [], []>} : vector<16x32xbf16>, vector<32x128xbf16>, vector<16x128xf32> -> vector<16x128xf32>
    %155 = arith.addf %131, %154 : vector<16x128xf32>
    %c6 = arith.constant 6 : index
    %c0_90 = arith.constant 0 : index
    %c0_91 = arith.constant 0 : index
    %156 = vector.load %arg1[%c6, %c0_90, %c0_91] : memref<7x16x16xbf16, #tpu.memory_space<vmem>>, vector<1x16x16xbf16>
    %157 = vector.shape_cast %156 : vector<1x16x16xbf16> to vector<16x16xbf16>
    %cst_92 = arith.constant dense<0.000000e+00> : vector<16x32xf32>
    %158 = tpu.matmul %157, %0, %cst_92 {dimension_numbers = #tpu.dot_dimension_numbers<[1], [0], [0], [1], [0, 0, 1, 1], [], []>} : vector<16x16xbf16>, vector<16x32xbf16>, vector<16x32xf32> -> vector<16x32xf32>
    %159 = vector.broadcast %1 : vector<1x32xf32> to vector<16x32xf32>
    %160 = arith.addf %158, %159 : vector<16x32xf32>
    %cst_93 = arith.constant 0.000000e+00 : f32
    %161 = vector.broadcast %cst_93 : f32 to vector<16x32xf32>
    %162 = arith.maximumf %160, %161 : vector<16x32xf32>
    %163 = arith.truncf %162 : vector<16x32xf32> to vector<16x32xbf16>
    %cst_94 = arith.constant dense<0.000000e+00> : vector<16x32xf32>
    %164 = tpu.matmul %163, %2, %cst_94 {dimension_numbers = #tpu.dot_dimension_numbers<[1], [0], [0], [1], [0, 0, 1, 1], [], []>} : vector<16x32xbf16>, vector<32x32xbf16>, vector<16x32xf32> -> vector<16x32xf32>
    %165 = vector.broadcast %3 : vector<1x32xf32> to vector<16x32xf32>
    %166 = arith.addf %164, %165 : vector<16x32xf32>
    %cst_95 = arith.constant 0.000000e+00 : f32
    %167 = vector.broadcast %cst_95 : f32 to vector<16x32xf32>
    %168 = arith.maximumf %166, %167 : vector<16x32xf32>
    %169 = arith.truncf %168 : vector<16x32xf32> to vector<16x32xbf16>
    %cst_96 = arith.constant dense<0.000000e+00> : vector<16x32xf32>
    %170 = tpu.matmul %169, %4, %cst_96 {dimension_numbers = #tpu.dot_dimension_numbers<[1], [0], [0], [1], [0, 0, 1, 1], [], []>} : vector<16x32xbf16>, vector<32x32xbf16>, vector<16x32xf32> -> vector<16x32xf32>
    %171 = vector.broadcast %5 : vector<1x32xf32> to vector<16x32xf32>
    %172 = arith.addf %170, %171 : vector<16x32xf32>
    %cst_97 = arith.constant 0.000000e+00 : f32
    %173 = vector.broadcast %cst_97 : f32 to vector<16x32xf32>
    %174 = arith.maximumf %172, %173 : vector<16x32xf32>
    %175 = arith.truncf %174 : vector<16x32xf32> to vector<16x32xbf16>
    %c6_98 = arith.constant 6 : index
    %c0_99 = arith.constant 0 : index
    %c0_100 = arith.constant 0 : index
    %176 = vector.load %arg10[%c6_98, %c0_99, %c0_100] : memref<7x32x128xbf16, #tpu.memory_space<vmem>>, vector<1x32x128xbf16>
    %177 = vector.shape_cast %176 : vector<1x32x128xbf16> to vector<32x128xbf16>
    %cst_101 = arith.constant dense<0.000000e+00> : vector<16x128xf32>
    %178 = tpu.matmul %175, %177, %cst_101 {dimension_numbers = #tpu.dot_dimension_numbers<[1], [0], [0], [1], [0, 0, 1, 1], [], []>} : vector<16x32xbf16>, vector<32x128xbf16>, vector<16x128xf32> -> vector<16x128xf32>
    %179 = arith.addf %155, %178 : vector<16x128xf32>
    %180 = tpu.iota {dimensions = array<i32: 1>} : vector<16x128xi32>
    %cst_102 = arith.constant 0.000000e+00 : f32
    %181 = vector.broadcast %cst_102 : f32 to vector<16x128xf32>
    %182 = arith.subf %181, %179 : vector<16x128xf32>
    %183 = math.exp %182 : vector<16x128xf32>
    %cst_103 = arith.constant 1.000000e+00 : f32
    %184 = vector.broadcast %cst_103 : f32 to vector<16x128xf32>
    %185 = arith.addf %184, %183 : vector<16x128xf32>
    %cst_104 = arith.constant 1.000000e+00 : f32
    %186 = vector.broadcast %cst_104 : f32 to vector<16x128xf32>
    %187 = arith.divf %186, %185 : vector<16x128xf32>
    %c12_i32 = arith.constant 12 : i32
    %188 = vector.broadcast %c12_i32 : i32 to vector<16x128xi32>
    %189 = arith.cmpi slt, %180, %188 : vector<16x128xi32>
    %190 = arith.select %189, %187, %179 : vector<16x128xi1>, vector<16x128xf32>
    %191 = arith.truncf %190 : vector<16x128xf32> to vector<16x128xbf16>
    %c0_105 = arith.constant 0 : index
    %c0_106 = arith.constant 0 : index
    %192 = vector.load %arg12[%c0_105, %c0_106] : memref<16x128xbf16, #tpu.memory_space<vmem>>, vector<16x128xbf16>
    tpu.vector_store %arg12[%c0_105, %c0_106], %191 {strides = array<i32>} : memref<16x128xbf16, #tpu.memory_space<vmem>>, vector<16x128xbf16>,
    return
  }
  func.func @transform_0(%arg0: i32) -> (i32, i32, i32) {
    %c0_i32 = arith.constant 0 : i32
    %c0_i32_0 = arith.constant 0 : i32
    %c0_i32_1 = arith.constant 0 : i32
    return %c0_i32, %arg0, %c0_i32_0 : i32, i32, i32
  }
  func.func @transform_1(%arg0: i32) -> (i32, i32) {
    %c0_i32 = arith.constant 0 : i32
    %c0_i32_0 = arith.constant 0 : i32
    return %arg0, %c0_i32 : i32, i32
  }
  func.func @transform_2(%arg0: i32) -> (i32, i32) {
    %c0_i32 = arith.constant 0 : i32
    %c0_i32_0 = arith.constant 0 : i32
    %c0_i32_1 = arith.constant 0 : i32
    return %c0_i32, %c0_i32_0 : i32, i32
  }
  func.func @transform_3(%arg0: i32) -> (i32, i32) {
    %c0_i32 = arith.constant 0 : i32
    %c0_i32_0 = arith.constant 0 : i32
    %c0_i32_1 = arith.constant 0 : i32
    return %c0_i32, %c0_i32_0 : i32, i32
  }
  func.func @transform_4(%arg0: i32) -> (i32, i32) {
    %c0_i32 = arith.constant 0 : i32
    %c0_i32_0 = arith.constant 0 : i32
    %c0_i32_1 = arith.constant 0 : i32
    return %c0_i32, %c0_i32_0 : i32, i32
  }
  func.func @transform_5(%arg0: i32) -> (i32, i32) {
    %c0_i32 = arith.constant 0 : i32
    %c0_i32_0 = arith.constant 0 : i32
    %c0_i32_1 = arith.constant 0 : i32
    return %c0_i32, %c0_i32_0 : i32, i32
  }
  func.func @transform_6(%arg0: i32) -> (i32, i32) {
    %c0_i32 = arith.constant 0 : i32
    %c0_i32_0 = arith.constant 0 : i32
    %c0_i32_1 = arith.constant 0 : i32
    return %c0_i32, %c0_i32_0 : i32, i32
  }
  func.func @transform_7(%arg0: i32) -> (i32, i32) {
    %c0_i32 = arith.constant 0 : i32
    %c0_i32_0 = arith.constant 0 : i32
    %c0_i32_1 = arith.constant 0 : i32
    return %c0_i32, %c0_i32_0 : i32, i32
  }
  func.func @transform_8(%arg0: i32) -> (i32, i32) {
    %c0_i32 = arith.constant 0 : i32
    %c0_i32_0 = arith.constant 0 : i32
    %c0_i32_1 = arith.constant 0 : i32
    return %c0_i32, %c0_i32_0 : i32, i32
  }
  func.func @transform_9(%arg0: i32) -> (i32, i32, i32) {
    %c0_i32 = arith.constant 0 : i32
    %c0_i32_0 = arith.constant 0 : i32
    %c0_i32_1 = arith.constant 0 : i32
    %c0_i32_2 = arith.constant 0 : i32
    return %c0_i32, %c0_i32_0, %c0_i32_1 : i32, i32, i32
  }
  func.func @transform_10(%arg0: i32) -> (i32, i32) {
    %c0_i32 = arith.constant 0 : i32
    %c0_i32_0 = arith.constant 0 : i32
    %c0_i32_1 = arith.constant 0 : i32
    return %c0_i32, %c0_i32_0 : i32, i32
  }
  func.func @transform_11(%arg0: i32) -> (i32, i32) {
    %c0_i32 = arith.constant 0 : i32
    %c0_i32_0 = arith.constant 0 : i32
    return %arg0, %c0_i32 : i32, i32
  }
}

</mosaic_0001>

<llo_original>
// kernel: plan_model_forward.1
$region0: #{plan_model_forward.1}
  #allocation0 [shape = 'u32[]', space=smem, size = 0x4, offset = 0x4, fixed_abs, tag = 'smem constant byte address 0x4 - core index']
  #allocation1 [shape = 'u32[72,128]{1,0:T(1,128)}', space=vmem, size = 0x9000, scoped, tag = 'internal scratch']
  %s0 = inlined_call_operand.vmem [shape: bf16[7,16,16], index: 0, kind: input, shape index: {}]
  %s1 = inlined_call_operand.vmem [shape: bf16[16,32], index: 1, kind: input, shape index: {}]
  %s2 = inlined_call_operand.vmem [shape: bf16[16,32], index: 2, kind: input, shape index: {}]
  %s3 = inlined_call_operand.vmem [shape: f32[1,32], index: 3, kind: input, shape index: {}]
  %s4 = inlined_call_operand.vmem [shape: bf16[32,32], index: 4, kind: input, shape index: {}]
  %s5 = inlined_call_operand.vmem [shape: f32[1,32], index: 5, kind: input, shape index: {}]
  %s6 = inlined_call_operand.vmem [shape: bf16[32,32], index: 6, kind: input, shape index: {}]
  %s7 = inlined_call_operand.vmem [shape: f32[1,32], index: 7, kind: input, shape index: {}]
  %s8 = inlined_call_operand.vmem [shape: bf16[32,128], index: 8, kind: input, shape index: {}]
  %s9 = inlined_call_operand.vmem [shape: bf16[7,32,128], index: 9, kind: input, shape index: {}]
  %s10 = inlined_call_operand.vmem [shape: f32[1,128], index: 10, kind: input, shape index: {}]
  %s11 = inlined_call_operand.vmem [shape: bf16[16,128], index: 11, kind: output, shape index: {}]
  %s12 = sld [smem:[#allocation0]]
  $region54: #{plan_model_forward.1} parent=0
    _
  %s14 = ssub.s32 1, %s12
  %s15 = scalar_select 0, %s14, %s12
  // Predicated region
  $region2: #{plan_model_forward.1} parent=0 // pred_check
    _
  $region3: #{plan_model_forward.1} parent=0 // pred_check_branch
    %17 = sbr.rel (0) target = $region5
  $region4: #{plan_model_forward.1} parent=0 // pred_region
    _
  $region5: #{plan_model_forward.1} parent=0 // pred_fallthru
    _
  // Predicated region
  $region6: #{plan_model_forward.1} parent=0 // pred_check
    _
  $region7: #{plan_model_forward.1} parent=0 // pred_check_branch
    %19 = sbr.rel (0) target = $region9
  $region8: #{plan_model_forward.1} parent=0 // pred_region
    _
  $region9: #{plan_model_forward.1} parent=0 // pred_fallthru
    _
  // Predicated region
  $region10: #{plan_model_forward.1} parent=0 // pred_check
    _
  $region11: #{plan_model_forward.1} parent=0 // pred_check_branch
    %21 = sbr.rel (0) target = $region13
  $region12: #{plan_model_forward.1} parent=0 // pred_region
    _
  $region13: #{plan_model_forward.1} parent=0 // pred_fallthru
    _
  // Predicated region
  $region14: #{plan_model_forward.1} parent=0 // pred_check
    _
  $region15: #{plan_model_forward.1} parent=0 // pred_check_branch
    %23 = sbr.rel (0) target = $region17
  $region16: #{plan_model_forward.1} parent=0 // pred_region
    _
  $region17: #{plan_model_forward.1} parent=0 // pred_fallthru
    _
  // Predicated region
  $region18: #{plan_model_forward.1} parent=0 // pred_check
    _
  $region19: #{plan_model_forward.1} parent=0 // pred_check_branch
    %25 = sbr.rel (0) target = $region21
  $region20: #{plan_model_forward.1} parent=0 // pred_region
    _
  $region21: #{plan_model_forward.1} parent=0 // pred_fallthru
    _
  // Predicated region
  $region22: #{plan_model_forward.1} parent=0 // pred_check
    _
  $region23: #{plan_model_forward.1} parent=0 // pred_check_branch
    %27 = sbr.rel (0) target = $region25
  $region24: #{plan_model_forward.1} parent=0 // pred_region
    _
  $region25: #{plan_model_forward.1} parent=0 // pred_fallthru
    _
  // Predicated region
  $region26: #{plan_model_forward.1} parent=0 // pred_check
    _
  $region27: #{plan_model_forward.1} parent=0 // pred_check_branch
    %29 = sbr.rel (0) target = $region29
  $region28: #{plan_model_forward.1} parent=0 // pred_region
    _
  $region29: #{plan_model_forward.1} parent=0 // pred_fallthru
    _
  // Predicated region
  $region30: #{plan_model_forward.1} parent=0 // pred_check
    _
  $region31: #{plan_model_forward.1} parent=0 // pred_check_branch
    %31 = sbr.rel (0) target = $region33
  $region32: #{plan_model_forward.1} parent=0 // pred_region
    _
  $region33: #{plan_model_forward.1} parent=0 // pred_fallthru
    _
  // Predicated region
  $region34: #{plan_model_forward.1} parent=0 // pred_check
    _
  $region35: #{plan_model_forward.1} parent=0 // pred_check_branch
    %33 = sbr.rel (0) target = $region37
  $region36: #{plan_model_forward.1} parent=0 // pred_region
    _
  $region37: #{plan_model_forward.1} parent=0 // pred_fallthru
    _
  // Predicated region
  $region38: #{plan_model_forward.1} parent=0 // pred_check
    _
  $region39: #{plan_model_forward.1} parent=0 // pred_check_branch
    %35 = sbr.rel (0) target = $region41
  $region40: #{plan_model_forward.1} parent=0 // pred_region
    _
  $region41: #{plan_model_forward.1} parent=0 // pred_fallthru
    _
  // Predicated region
  $region42: #{plan_model_forward.1} parent=0 // pred_check
    _
  $region43: #{plan_model_forward.1} parent=0 // pred_check_branch
    %37 = sbr.rel (0) target = $region45
  $region44: #{plan_model_forward.1} parent=0 // pred_region
    _
  $region45: #{plan_model_forward.1} parent=0 // pred_fallthru
    _
  %v39 = vld [vmem:[%s2] sm:$0xf]
  %v40 = vld [vmem:[%s2 + $0x4] sm:$0xf]
  %v41 = vld [vmem:[%s3] sm:$0x1]
  %v42 = vld [vmem:[%s4] sm:$0xf]
  %v43 = vld [vmem:[%s4 + $0x4] sm:$0xf]
  %v44 = vld [vmem:[%s4 + $0x8] sm:$0xf]
  %v45 = vld [vmem:[%s4 + $0xc] sm:$0xf]
  %v46 = vld [vmem:[%s5] sm:$0x1]
  %v47 = vld [vmem:[%s6] sm:$0xf]
  %v48 = vld [vmem:[%s6 + $0x4] sm:$0xf]
  %v49 = vld [vmem:[%s6 + $0x8] sm:$0xf]
  %v50 = vld [vmem:[%s6 + $0xc] sm:$0xf]
  %v51 = vld [vmem:[%s7] sm:$0x1]
  %v52 = vld [vmem:[%s1] sm:$0xf]
  %v53 = vld [vmem:[%s1 + $0x4] sm:$0xf]
  %v54 = vld [vmem:[%s8] sm:$0xf]
  %v55 = vld [vmem:[%s8 + $0x4] sm:$0xf]
  %v56 = vld [vmem:[%s8 + $0x8] sm:$0xf]
  %v57 = vld [vmem:[%s8 + $0xc] sm:$0xf]
  %v58 = vld [vmem:[%s10] sm:$0x1]
  %v60 = vperm.slane %v58, 0
  %v64 = vunpack.c.l.b16 %v52
  %v65 = vunpack.c.l.b16 %v53
  %v66 = vpack.c.b16 %v65, %v64
  %v71 = vunpack.c.l.b16 %v54
  %v72 = vunpack.c.l.b16 %v55
  %v73 = vunpack.c.l.b16 %v56
  %v74 = vunpack.c.l.b16 %v57
  %v75 = vpack.c.b16 %v72, %v71
  %v76 = vpack.c.b16 %v74, %v73
  %vm79 = vcmask 261120
  %v81 = vsel %vm79, %v66, 0
  %83 = vmatpush.bf16.msra.mxu0 0
  %84 = vmatpush.bf16.msra.mxu0 0
  %85 = vmatpush.bf16.msra.mxu0 0
  %86 = vmatpush.bf16.msra.mxu0 0
  %87 = vmatpush.bf16.msra.mxu0 0
  %88 = vmatpush.bf16.msra.mxu0 0
  %89 = vmatpush.bf16.msra.mxu0 %v76
  %90 = vmatpush.bf16.msra.mxu0 %v75
  %91 = vmatmul.bf16.gmra.mxu0 %v81
  %v92 = vpop.f32.mrf.mxu0
  %v93 = vadd.f32 %v60, %v92
  %v94 = vpop.f32.mrf.mxu0
  %v95 = vadd.f32 %v60, %v94
  %96 = vdwg.mxu0
  %v97 = vld [vmem:[%s0] sm:$0xf]
  %v98 = vld [vmem:[%s0 + $0x4] sm:$0xf]
  %v100 = vperm.slane %v41, 0
  %v104 = vunpack.c.l.b16 %v97
  %v105 = vunpack.c.l.b16 %v98
  %v106 = vpack.c.b16 %v105, %v104
  %v109 = vunpack.c.l.b16 %v39
  %v110 = vunpack.c.l.b16 %v40
  %v111 = vpack.c.b16 %v110, %v109
  %vm113 = vcmask 130048
  %v115 = vsel %vm113, %v106, 0
  %117 = vmatpush.bf16.msra.mxu0 0
  %118 = vmatpush.bf16.msra.mxu0 0
  %119 = vmatpush.bf16.msra.mxu0 0
  %120 = vmatpush.bf16.msra.mxu0 0
  %121 = vmatpush.bf16.msra.mxu0 0
  %122 = vmatpush.bf16.msra.mxu0 0
  %123 = vmatpush.bf16.msra.mxu0 0
  %124 = vmatpush.bf16.msra.mxu0 %v111
  %125 = vmatmul.bf16.gmra.mxu0 %v115
  %v126 = vpop.f32.mrf.mxu0
  %v127 = vadd.f32 %v100, %v126
  %v128 = vpop.f32.mrf.mxu0
  %v129 = vadd.f32 %v100, %v128
  %130 = vdwg.mxu0
  %v131 = vmax.f32 %v127, 0.0
  %v132 = vmax.f32 %v129, 0.0
  %v133 = vpack.c.bf16 %v132, %v131
  %v135 = vperm.slane %v46, 0
  %v141 = vunpack.c.l.b16 %v42
  %v142 = vunpack.c.l.b16 %v43
  %v143 = vunpack.c.l.b16 %v44
  %v144 = vunpack.c.l.b16 %v45
  %v145 = vpack.c.b16 %v142, %v141
  %v146 = vpack.c.b16 %v144, %v143
  %v150 = vsel %vm79, %v133, 0
  %152 = vmatpush.bf16.msra.mxu0 0
  %153 = vmatpush.bf16.msra.mxu0 0
  %154 = vmatpush.bf16.msra.mxu0 0
  %155 = vmatpush.bf16.msra.mxu0 0
  %156 = vmatpush.bf16.msra.mxu0 0
  %157 = vmatpush.bf16.msra.mxu0 0
  %158 = vmatpush.bf16.msra.mxu0 %v146
  %159 = vmatpush.bf16.msra.mxu0 %v145
  %160 = vmatmul.bf16.gmra.mxu0 %v150
  %v161 = vpop.f32.mrf.mxu0
  %v162 = vadd.f32 %v135, %v161
  %v163 = vpop.f32.mrf.mxu0
  %v164 = vadd.f32 %v135, %v163
  %165 = vdwg.mxu0
  %v166 = vmax.f32 %v162, 0.0
  %v167 = vmax.f32 %v164, 0.0
  %v168 = vpack.c.bf16 %v167, %v166
  %v170 = vperm.slane %v51, 0
  %v176 = vunpack.c.l.b16 %v47
  %v177 = vunpack.c.l.b16 %v48
  %v178 = vunpack.c.l.b16 %v49
  %v179 = vunpack.c.l.b16 %v50
  %v180 = vpack.c.b16 %v177, %v176
  %v181 = vpack.c.b16 %v179, %v178
  %v185 = vsel %vm79, %v168, 0
  %187 = vmatpush.bf16.msra.mxu0 0
  %188 = vmatpush.bf16.msra.mxu0 0
  %189 = vmatpush.bf16.msra.mxu0 0
  %190 = vmatpush.bf16.msra.mxu0 0
  %191 = vmatpush.bf16.msra.mxu0 0
  %192 = vmatpush.bf16.msra.mxu0 0
  %193 = vmatpush.bf16.msra.mxu0 %v181
  %194 = vmatpush.bf16.msra.mxu0 %v180
  %195 = vmatmul.bf16.gmra.mxu0 %v185
  %v196 = vpop.f32.mrf.mxu0
  %v197 = vadd.f32 %v170, %v196
  %v198 = vpop.f32.mrf.mxu0
  %v199 = vadd.f32 %v170, %v198
  %200 = vdwg.mxu0
  %v201 = vmax.f32 %v197, 0.0
  %v202 = vmax.f32 %v199, 0.0
  %v203 = vpack.c.bf16 %v202, %v201
  %v204 = vld [vmem:[%s9] sm:$0xf]
  %v205 = vld [vmem:[%s9 + $0x4] sm:$0xf]
  %v206 = vld [vmem:[%s9 + $0x8] sm:$0xf]
  %v207 = vld [vmem:[%s9 + $0xc] sm:$0xf]
  %v212 = vunpack.c.l.b16 %v204
  %v213 = vunpack.c.l.b16 %v205
  %v214 = vunpack.c.l.b16 %v206
  %v215 = vunpack.c.l.b16 %v207
  %v216 = vpack.c.b16 %v213, %v212
  %v217 = vpack.c.b16 %v215, %v214
  %v221 = vsel %vm79, %v203, 0
  %223 = vmatpush.bf16.msra.mxu0 0
  %224 = vmatpush.bf16.msra.mxu0 0
  %225 = vmatpush.bf16.msra.mxu0 0
  %226 = vmatpush.bf16.msra.mxu0 0
  %227 = vmatpush.bf16.msra.mxu0 0
  %228 = vmatpush.bf16.msra.mxu0 0
  %229 = vmatpush.bf16.msra.mxu0 %v217
  %230 = vmatpush.bf16.msra.mxu0 %v216
  %231 = vmatmul.bf16.gmra.mxu0 %v221
  %v232 = vpop.f32.mrf.mxu0
  %v233 = vadd.f32 0.0, %v232
  %v234 = vpop.f32.mrf.mxu0
  %v235 = vadd.f32 0.0, %v234
  %236 = vdwg.mxu0
  %v237 = vadd.f32 %v93, %v233
  %v238 = vadd.f32 %v95, %v235
  %s239 = scalar_lea.vmem %s0, 8
  %v240 = vld [vmem:[%s239] sm:$0xf]
  %v241 = vld [vmem:[%s239 + $0x4] sm:$0xf]
  %v244 = vunpack.c.l.b16 %v240
  %v245 = vunpack.c.l.b16 %v241
  %v246 = vpack.c.b16 %v245, %v244
  %v248 = vsel %vm113, %v246, 0
  %250 = vmatpush.bf16.msra.mxu0 0
  %251 = vmatpush.bf16.msra.mxu0 0
  %252 = vmatpush.bf16.msra.mxu0 0
  %253 = vmatpush.bf16.msra.mxu0 0
  %254 = vmatpush.bf16.msra.mxu0 0
  %255 = vmatpush.bf16.msra.mxu0 0
  %256 = vmatpush.bf16.msra.mxu0 0
  %257 = vmatpush.bf16.msra.mxu0 %v111
  %258 = vmatmul.bf16.gmra.mxu0 %v248
  %v259 = vpop.f32.mrf.mxu0
  %v260 = vadd.f32 %v100, %v259
  %v261 = vpop.f32.mrf.mxu0
  %v262 = vadd.f32 %v100, %v261
  %263 = vdwg.mxu0
  %v264 = vmax.f32 %v260, 0.0
  %v265 = vmax.f32 %v262, 0.0
  %v266 = vpack.c.bf16 %v265, %v264
  %v268 = vsel %vm79, %v266, 0
  %270 = vmatpush.bf16.msra.mxu0 0
  %271 = vmatpush.bf16.msra.mxu0 0
  %272 = vmatpush.bf16.msra.mxu0 0
  %273 = vmatpush.bf16.msra.mxu0 0
  %274 = vmatpush.bf16.msra.mxu0 0
  %275 = vmatpush.bf16.msra.mxu0 0
  %276 = vmatpush.bf16.msra.mxu0 %v146
  %277 = vmatpush.bf16.msra.mxu0 %v145
  %278 = vmatmul.bf16.gmra.mxu0 %v268
  %v279 = vpop.f32.mrf.mxu0
  %v280 = vadd.f32 %v135, %v279
  %v281 = vpop.f32.mrf.mxu0
  %v282 = vadd.f32 %v135, %v281
  %283 = vdwg.mxu0
  %v284 = vmax.f32 %v280, 0.0
  %v285 = vmax.f32 %v282, 0.0
  %v286 = vpack.c.bf16 %v285, %v284
  %v288 = vsel %vm79, %v286, 0
  %290 = vmatpush.bf16.msra.mxu0 0
  %291 = vmatpush.bf16.msra.mxu0 0
  %292 = vmatpush.bf16.msra.mxu0 0
  %293 = vmatpush.bf16.msra.mxu0 0
  %294 = vmatpush.bf16.msra.mxu0 0
  %295 = vmatpush.bf16.msra.mxu0 0
  %296 = vmatpush.bf16.msra.mxu0 %v181
  %297 = vmatpush.bf16.msra.mxu0 %v180
  %298 = vmatmul.bf16.gmra.mxu0 %v288
  %v299 = vpop.f32.mrf.mxu0
  %v300 = vadd.f32 %v170, %v299
  %v301 = vpop.f32.mrf.mxu0
  %v302 = vadd.f32 %v170, %v301
  %303 = vdwg.mxu0
  %v304 = vmax.f32 %v300, 0.0
  %v305 = vmax.f32 %v302, 0.0
  %v306 = vpack.c.bf16 %v305, %v304
  %s307 = scalar_lea.vmem %s9, 16
  %v308 = vld [vmem:[%s307] sm:$0xf]
  %v309 = vld [vmem:[%s307 + $0x4] sm:$0xf]
  %v310 = vld [vmem:[%s307 + $0x8] sm:$0xf]
  %v311 = vld [vmem:[%s307 + $0xc] sm:$0xf]
  %v316 = vunpack.c.l.b16 %v308
  %v317 = vunpack.c.l.b16 %v309
  %v318 = vunpack.c.l.b16 %v310
  %v319 = vunpack.c.l.b16 %v311
  %v320 = vpack.c.b16 %v317, %v316
  %v321 = vpack.c.b16 %v319, %v318
  %v325 = vsel %vm79, %v306, 0
  %327 = vmatpush.bf16.msra.mxu0 0
  %328 = vmatpush.bf16.msra.mxu0 0
  %329 = vmatpush.bf16.msra.mxu0 0
  %330 = vmatpush.bf16.msra.mxu0 0
  %331 = vmatpush.bf16.msra.mxu0 0
  %332 = vmatpush.bf16.msra.mxu0 0
  %333 = vmatpush.bf16.msra.mxu0 %v321
  %334 = vmatpush.bf16.msra.mxu0 %v320
  %335 = vmatmul.bf16.gmra.mxu0 %v325
  %v336 = vpop.f32.mrf.mxu0
  %v337 = vadd.f32 0.0, %v336
  %v338 = vpop.f32.mrf.mxu0
  %v339 = vadd.f32 0.0, %v338
  %340 = vdwg.mxu0
  %v341 = vadd.f32 %v237, %v337
  %v342 = vadd.f32 %v238, %v339
  %s343 = scalar_lea.vmem %s0, 16
  %v344 = vld [vmem:[%s343] sm:$0xf]
  %v345 = vld [vmem:[%s343 + $0x4] sm:$0xf]
  %v348 = vunpack.c.l.b16 %v344
  %v349 = vunpack.c.l.b16 %v345
  %v350 = vpack.c.b16 %v349, %v348
  %v352 = vsel %vm113, %v350, 0
  %354 = vmatpush.bf16.msra.mxu0 0
  %355 = vmatpush.bf16.msra.mxu0 0
  %356 = vmatpush.bf16.msra.mxu0 0
  %357 = vmatpush.bf16.msra.mxu0 0
  %358 = vmatpush.bf16.msra.mxu0 0
  %359 = vmatpush.bf16.msra.mxu0 0
  %360 = vmatpush.bf16.msra.mxu0 0
  %361 = vmatpush.bf16.msra.mxu0 %v111
  %362 = vmatmul.bf16.gmra.mxu0 %v352
  %v363 = vpop.f32.mrf.mxu0
  %v364 = vadd.f32 %v100, %v363
  %v365 = vpop.f32.mrf.mxu0
  %v366 = vadd.f32 %v100, %v365
  %367 = vdwg.mxu0
  %v368 = vmax.f32 %v364, 0.0
  %v369 = vmax.f32 %v366, 0.0
  %v370 = vpack.c.bf16 %v369, %v368
  %v372 = vsel %vm79, %v370, 0
  %374 = vmatpush.bf16.msra.mxu0 0
  %375 = vmatpush.bf16.msra.mxu0 0
  %376 = vmatpush.bf16.msra.mxu0 0
  %377 = vmatpush.bf16.msra.mxu0 0
  %378 = vmatpush.bf16.msra.mxu0 0
  %379 = vmatpush.bf16.msra.mxu0 0
  %380 = vmatpush.bf16.msra.mxu0 %v146
  %381 = vmatpush.bf16.msra.mxu0 %v145
  %382 = vmatmul.bf16.gmra.mxu0 %v372
  %v383 = vpop.f32.mrf.mxu0
  %v384 = vadd.f32 %v135, %v383
  %v385 = vpop.f32.mrf.mxu0
  %v386 = vadd.f32 %v135, %v385
  %387 = vdwg.mxu0
  %v388 = vmax.f32 %v384, 0.0
  %v389 = vmax.f32 %v386, 0.0
  %v390 = vpack.c.bf16 %v389, %v388
  %v392 = vsel %vm79, %v390, 0
  %394 = vmatpush.bf16.msra.mxu0 0
  %395 = vmatpush.bf16.msra.mxu0 0
  %396 = vmatpush.bf16.msra.mxu0 0
  %397 = vmatpush.bf16.msra.mxu0 0
  %398 = vmatpush.bf16.msra.mxu0 0
  %399 = vmatpush.bf16.msra.mxu0 0
  %400 = vmatpush.bf16.msra.mxu0 %v181
  %401 = vmatpush.bf16.msra.mxu0 %v180
  %402 = vmatmul.bf16.gmra.mxu0 %v392
  %v403 = vpop.f32.mrf.mxu0
  %v404 = vadd.f32 %v170, %v403
  %v405 = vpop.f32.mrf.mxu0
  %v406 = vadd.f32 %v170, %v405
  %407 = vdwg.mxu0
  %v408 = vmax.f32 %v404, 0.0
  %v409 = vmax.f32 %v406, 0.0
  %v410 = vpack.c.bf16 %v409, %v408
  %s411 = scalar_lea.vmem %s9, 32
  %v412 = vld [vmem:[%s411] sm:$0xf]
  %v413 = vld [vmem:[%s411 + $0x4] sm:$0xf]
  %v414 = vld [vmem:[%s411 + $0x8] sm:$0xf]
  %v415 = vld [vmem:[%s411 + $0xc] sm:$0xf]
  %v420 = vunpack.c.l.b16 %v412
  %v421 = vunpack.c.l.b16 %v413
  %v422 = vunpack.c.l.b16 %v414
  %v423 = vunpack.c.l.b16 %v415
  %v424 = vpack.c.b16 %v421, %v420
  %v425 = vpack.c.b16 %v423, %v422
  %v429 = vsel %vm79, %v410, 0
  %431 = vmatpush.bf16.msra.mxu0 0
  %432 = vmatpush.bf16.msra.mxu0 0
  %433 = vmatpush.bf16.msra.mxu0 0
  %434 = vmatpush.bf16.msra.mxu0 0
  %435 = vmatpush.bf16.msra.mxu0 0
  %436 = vmatpush.bf16.msra.mxu0 0
  %437 = vmatpush.bf16.msra.mxu0 %v425
  %438 = vmatpush.bf16.msra.mxu0 %v424
  %439 = vmatmul.bf16.gmra.mxu0 %v429
  %v440 = vpop.f32.mrf.mxu0
  %v441 = vadd.f32 0.0, %v440
  %v442 = vpop.f32.mrf.mxu0
  %v443 = vadd.f32 0.0, %v442
  %444 = vdwg.mxu0
  %v445 = vadd.f32 %v341, %v441
  %v446 = vadd.f32 %v342, %v443
  %s447 = scalar_lea.vmem %s0, 24
  %v448 = vld [vmem:[%s447] sm:$0xf]
  %v449 = vld [vmem:[%s447 + $0x4] sm:$0xf]
  %v452 = vunpack.c.l.b16 %v448
  %v453 = vunpack.c.l.b16 %v449
  %v454 = vpack.c.b16 %v453, %v452
  %v456 = vsel %vm113, %v454, 0
  %458 = vmatpush.bf16.msra.mxu0 0
  %459 = vmatpush.bf16.msra.mxu0 0
  %460 = vmatpush.bf16.msra.mxu0 0
  %461 = vmatpush.bf16.msra.mxu0 0
  %462 = vmatpush.bf16.msra.mxu0 0
  %463 = vmatpush.bf16.msra.mxu0 0
  %464 = vmatpush.bf16.msra.mxu0 0
  %465 = vmatpush.bf16.msra.mxu0 %v111
  %466 = vmatmul.bf16.gmra.mxu0 %v456
  %v467 = vpop.f32.mrf.mxu0
  %v468 = vadd.f32 %v100, %v467
  %v469 = vpop.f32.mrf.mxu0
  %v470 = vadd.f32 %v100, %v469
  %471 = vdwg.mxu0
  %v472 = vmax.f32 %v468, 0.0
  %v473 = vmax.f32 %v470, 0.0
  %v474 = vpack.c.bf16 %v473, %v472
  %v476 = vsel %vm79, %v474, 0
  %478 = vmatpush.bf16.msra.mxu0 0
  %479 = vmatpush.bf16.msra.mxu0 0
  %480 = vmatpush.bf16.msra.mxu0 0
  %481 = vmatpush.bf16.msra.mxu0 0
  %482 = vmatpush.bf16.msra.mxu0 0
  %483 = vmatpush.bf16.msra.mxu0 0
  %484 = vmatpush.bf16.msra.mxu0 %v146
  %485 = vmatpush.bf16.msra.mxu0 %v145
  %486 = vmatmul.bf16.gmra.mxu0 %v476
  %v487 = vpop.f32.mrf.mxu0
  %v488 = vadd.f32 %v135, %v487
  %v489 = vpop.f32.mrf.mxu0
  %v490 = vadd.f32 %v135, %v489
  %491 = vdwg.mxu0
  %v492 = vmax.f32 %v488, 0.0
  %v493 = vmax.f32 %v490, 0.0
  %v494 = vpack.c.bf16 %v493, %v492
  %v496 = vsel %vm79, %v494, 0
  %498 = vmatpush.bf16.msra.mxu0 0
  %499 = vmatpush.bf16.msra.mxu0 0
  %500 = vmatpush.bf16.msra.mxu0 0
  %501 = vmatpush.bf16.msra.mxu0 0
  %502 = vmatpush.bf16.msra.mxu0 0
  %503 = vmatpush.bf16.msra.mxu0 0
  %504 = vmatpush.bf16.msra.mxu0 %v181
  %505 = vmatpush.bf16.msra.mxu0 %v180
  %506 = vmatmul.bf16.gmra.mxu0 %v496
  %v507 = vpop.f32.mrf.mxu0
  %v508 = vadd.f32 %v170, %v507
  %v509 = vpop.f32.mrf.mxu0
  %v510 = vadd.f32 %v170, %v509
  %511 = vdwg.mxu0
  %v512 = vmax.f32 %v508, 0.0
  %v513 = vmax.f32 %v510, 0.0
  %v514 = vpack.c.bf16 %v513, %v512
  %s515 = scalar_lea.vmem %s9, 48
  %v516 = vld [vmem:[%s515] sm:$0xf]
  %v517 = vld [vmem:[%s515 + $0x4] sm:$0xf]
  %v518 = vld [vmem:[%s515 + $0x8] sm:$0xf]
  %v519 = vld [vmem:[%s515 + $0xc] sm:$0xf]
  %v524 = vunpack.c.l.b16 %v516
  %v525 = vunpack.c.l.b16 %v517
  %v526 = vunpack.c.l.b16 %v518
  %v527 = vunpack.c.l.b16 %v519
  %v528 = vpack.c.b16 %v525, %v524
  %v529 = vpack.c.b16 %v527, %v526
  %v533 = vsel %vm79, %v514, 0
  %535 = vmatpush.bf16.msra.mxu0 0
  %536 = vmatpush.bf16.msra.mxu0 0
  %537 = vmatpush.bf16.msra.mxu0 0
  %538 = vmatpush.bf16.msra.mxu0 0
  %539 = vmatpush.bf16.msra.mxu0 0
  %540 = vmatpush.bf16.msra.mxu0 0
  %541 = vmatpush.bf16.msra.mxu0 %v529
  %542 = vmatpush.bf16.msra.mxu0 %v528
  %543 = vmatmul.bf16.gmra.mxu0 %v533
  %v544 = vpop.f32.mrf.mxu0
  %v545 = vadd.f32 0.0, %v544
  %v546 = vpop.f32.mrf.mxu0
  %v547 = vadd.f32 0.0, %v546
  %548 = vdwg.mxu0
  %v549 = vadd.f32 %v445, %v545
  %v550 = vadd.f32 %v446, %v547
  %s551 = scalar_lea.vmem %s0, 32
  %v552 = vld [vmem:[%s551] sm:$0xf]
  %v553 = vld [vmem:[%s551 + $0x4] sm:$0xf]
  %v556 = vunpack.c.l.b16 %v552
  %v557 = vunpack.c.l.b16 %v553
  %v558 = vpack.c.b16 %v557, %v556
  %v560 = vsel %vm113, %v558, 0
  %562 = vmatpush.bf16.msra.mxu0 0
  %563 = vmatpush.bf16.msra.mxu0 0
  %564 = vmatpush.bf16.msra.mxu0 0
  %565 = vmatpush.bf16.msra.mxu0 0
  %566 = vmatpush.bf16.msra.mxu0 0
  %567 = vmatpush.bf16.msra.mxu0 0
  %568 = vmatpush.bf16.msra.mxu0 0
  %569 = vmatpush.bf16.msra.mxu0 %v111
  %570 = vmatmul.bf16.gmra.mxu0 %v560
  %v571 = vpop.f32.mrf.mxu0
  %v572 = vadd.f32 %v100, %v571
  %v573 = vpop.f32.mrf.mxu0
  %v574 = vadd.f32 %v100, %v573
  %575 = vdwg.mxu0
  %v576 = vmax.f32 %v572, 0.0
  %v577 = vmax.f32 %v574, 0.0
  %v578 = vpack.c.bf16 %v577, %v576
  %v580 = vsel %vm79, %v578, 0
  %582 = vmatpush.bf16.msra.mxu0 0
  %583 = vmatpush.bf16.msra.mxu0 0
  %584 = vmatpush.bf16.msra.mxu0 0
  %585 = vmatpush.bf16.msra.mxu0 0
  %586 = vmatpush.bf16.msra.mxu0 0
  %587 = vmatpush.bf16.msra.mxu0 0
  %588 = vmatpush.bf16.msra.mxu0 %v146
  %589 = vmatpush.bf16.msra.mxu0 %v145
  %590 = vmatmul.bf16.gmra.mxu0 %v580
  %v591 = vpop.f32.mrf.mxu0
  %v592 = vadd.f32 %v135, %v591
  %v593 = vpop.f32.mrf.mxu0
  %v594 = vadd.f32 %v135, %v593
  %595 = vdwg.mxu0
  %v596 = vmax.f32 %v592, 0.0
  %v597 = vmax.f32 %v594, 0.0
  %v598 = vpack.c.bf16 %v597, %v596
  %v600 = vsel %vm79, %v598, 0
  %602 = vmatpush.bf16.msra.mxu0 0
  %603 = vmatpush.bf16.msra.mxu0 0
  %604 = vmatpush.bf16.msra.mxu0 0
  %605 = vmatpush.bf16.msra.mxu0 0
  %606 = vmatpush.bf16.msra.mxu0 0
  %607 = vmatpush.bf16.msra.mxu0 0
  %608 = vmatpush.bf16.msra.mxu0 %v181
  %609 = vmatpush.bf16.msra.mxu0 %v180
  %610 = vmatmul.bf16.gmra.mxu0 %v600
  %v611 = vpop.f32.mrf.mxu0
  %v612 = vadd.f32 %v170, %v611
  %v613 = vpop.f32.mrf.mxu0
  %v614 = vadd.f32 %v170, %v613
  %615 = vdwg.mxu0
  %v616 = vmax.f32 %v612, 0.0
  %v617 = vmax.f32 %v614, 0.0
  %v618 = vpack.c.bf16 %v617, %v616
  %s619 = scalar_lea.vmem %s9, 64
  %v620 = vld [vmem:[%s619] sm:$0xf]
  %v621 = vld [vmem:[%s619 + $0x4] sm:$0xf]
  %v622 = vld [vmem:[%s619 + $0x8] sm:$0xf]
  %v623 = vld [vmem:[%s619 + $0xc] sm:$0xf]
  %v628 = vunpack.c.l.b16 %v620
  %v629 = vunpack.c.l.b16 %v621
  %v630 = vunpack.c.l.b16 %v622
  %v631 = vunpack.c.l.b16 %v623
  %v632 = vpack.c.b16 %v629, %v628
  %v633 = vpack.c.b16 %v631, %v630
  %v637 = vsel %vm79, %v618, 0
  %639 = vmatpush.bf16.msra.mxu0 0
  %640 = vmatpush.bf16.msra.mxu0 0
  %641 = vmatpush.bf16.msra.mxu0 0
  %642 = vmatpush.bf16.msra.mxu0 0
  %643 = vmatpush.bf16.msra.mxu0 0
  %644 = vmatpush.bf16.msra.mxu0 0
  %645 = vmatpush.bf16.msra.mxu0 %v633
  %646 = vmatpush.bf16.msra.mxu0 %v632
  %647 = vmatmul.bf16.gmra.mxu0 %v637
  %v648 = vpop.f32.mrf.mxu0
  %v649 = vadd.f32 0.0, %v648
  %v650 = vpop.f32.mrf.mxu0
  %v651 = vadd.f32 0.0, %v650
  %652 = vdwg.mxu0
  %v653 = vadd.f32 %v549, %v649
  %v654 = vadd.f32 %v550, %v651
  %s655 = scalar_lea.vmem %s0, 40
  %v656 = vld [vmem:[%s655] sm:$0xf]
  %v657 = vld [vmem:[%s655 + $0x4] sm:$0xf]
  %v660 = vunpack.c.l.b16 %v656
  %v661 = vunpack.c.l.b16 %v657
  %v662 = vpack.c.b16 %v661, %v660
  %v664 = vsel %vm113, %v662, 0
  %666 = vmatpush.bf16.msra.mxu0 0
  %667 = vmatpush.bf16.msra.mxu0 0
  %668 = vmatpush.bf16.msra.mxu0 0
  %669 = vmatpush.bf16.msra.mxu0 0
  %670 = vmatpush.bf16.msra.mxu0 0
  %671 = vmatpush.bf16.msra.mxu0 0
  %672 = vmatpush.bf16.msra.mxu0 0
  %673 = vmatpush.bf16.msra.mxu0 %v111
  %674 = vmatmul.bf16.gmra.mxu0 %v664
  %v675 = vpop.f32.mrf.mxu0
  %v676 = vadd.f32 %v100, %v675
  %v677 = vpop.f32.mrf.mxu0
  %v678 = vadd.f32 %v100, %v677
  %679 = vdwg.mxu0
  %v680 = vmax.f32 %v676, 0.0
  %v681 = vmax.f32 %v678, 0.0
  %v682 = vpack.c.bf16 %v681, %v680
  %v684 = vsel %vm79, %v682, 0
  %686 = vmatpush.bf16.msra.mxu0 0
  %687 = vmatpush.bf16.msra.mxu0 0
  %688 = vmatpush.bf16.msra.mxu0 0
  %689 = vmatpush.bf16.msra.mxu0 0
  %690 = vmatpush.bf16.msra.mxu0 0
  %691 = vmatpush.bf16.msra.mxu0 0
  %692 = vmatpush.bf16.msra.mxu0 %v146
  %693 = vmatpush.bf16.msra.mxu0 %v145
  %694 = vmatmul.bf16.gmra.mxu0 %v684
  %v695 = vpop.f32.mrf.mxu0
  %v696 = vadd.f32 %v135, %v695
  %v697 = vpop.f32.mrf.mxu0
  %v698 = vadd.f32 %v135, %v697
  %699 = vdwg.mxu0
  %v700 = vmax.f32 %v696, 0.0
  %v701 = vmax.f32 %v698, 0.0
  %v702 = vpack.c.bf16 %v701, %v700
  %v704 = vsel %vm79, %v702, 0
  %706 = vmatpush.bf16.msra.mxu0 0
  %707 = vmatpush.bf16.msra.mxu0 0
  %708 = vmatpush.bf16.msra.mxu0 0
  %709 = vmatpush.bf16.msra.mxu0 0
  %710 = vmatpush.bf16.msra.mxu0 0
  %711 = vmatpush.bf16.msra.mxu0 0
  %712 = vmatpush.bf16.msra.mxu0 %v181
  %713 = vmatpush.bf16.msra.mxu0 %v180
  %714 = vmatmul.bf16.gmra.mxu0 %v704
  %v715 = vpop.f32.mrf.mxu0
  %v716 = vadd.f32 %v170, %v715
  %v717 = vpop.f32.mrf.mxu0
  %v718 = vadd.f32 %v170, %v717
  %719 = vdwg.mxu0
  %v720 = vmax.f32 %v716, 0.0
  %v721 = vmax.f32 %v718, 0.0
  %v722 = vpack.c.bf16 %v721, %v720
  %s723 = scalar_lea.vmem %s9, 80
  %v724 = vld [vmem:[%s723] sm:$0xf]
  %v725 = vld [vmem:[%s723 + $0x4] sm:$0xf]
  %v726 = vld [vmem:[%s723 + $0x8] sm:$0xf]
  %v727 = vld [vmem:[%s723 + $0xc] sm:$0xf]
  %v732 = vunpack.c.l.b16 %v724
  %v733 = vunpack.c.l.b16 %v725
  %v734 = vunpack.c.l.b16 %v726
  %v735 = vunpack.c.l.b16 %v727
  %v736 = vpack.c.b16 %v733, %v732
  %v737 = vpack.c.b16 %v735, %v734
  %v741 = vsel %vm79, %v722, 0
  %743 = vmatpush.bf16.msra.mxu0 0
  %744 = vmatpush.bf16.msra.mxu0 0
  %745 = vmatpush.bf16.msra.mxu0 0
  %746 = vmatpush.bf16.msra.mxu0 0
  %747 = vmatpush.bf16.msra.mxu0 0
  %748 = vmatpush.bf16.msra.mxu0 0
  %749 = vmatpush.bf16.msra.mxu0 %v737
  %750 = vmatpush.bf16.msra.mxu0 %v736
  %751 = vmatmul.bf16.gmra.mxu0 %v741
  %v752 = vpop.f32.mrf.mxu0
  %v753 = vadd.f32 0.0, %v752
  %v754 = vpop.f32.mrf.mxu0
  %v755 = vadd.f32 0.0, %v754
  %756 = vdwg.mxu0
  %v757 = vadd.f32 %v653, %v753
  %v758 = vadd.f32 %v654, %v755
  %s759 = scalar_lea.vmem %s0, 48
  %v760 = vld [vmem:[%s759] sm:$0xf]
  %v761 = vld [vmem:[%s759 + $0x4] sm:$0xf]
  %v764 = vunpack.c.l.b16 %v760
  %v765 = vunpack.c.l.b16 %v761
  %v766 = vpack.c.b16 %v765, %v764
  %v768 = vsel %vm113, %v766, 0
  %770 = vmatpush.bf16.msra.mxu0 0
  %771 = vmatpush.bf16.msra.mxu0 0
  %772 = vmatpush.bf16.msra.mxu0 0
  %773 = vmatpush.bf16.msra.mxu0 0
  %774 = vmatpush.bf16.msra.mxu0 0
  %775 = vmatpush.bf16.msra.mxu0 0
  %776 = vmatpush.bf16.msra.mxu0 0
  %777 = vmatpush.bf16.msra.mxu0 %v111
  %778 = vmatmul.bf16.gmra.mxu0 %v768
  %v779 = vpop.f32.mrf.mxu0
  %v780 = vadd.f32 %v100, %v779
  %v781 = vpop.f32.mrf.mxu0
  %v782 = vadd.f32 %v100, %v781
  %783 = vdwg.mxu0
  %v784 = vmax.f32 %v780, 0.0
  %v785 = vmax.f32 %v782, 0.0
  %v786 = vpack.c.bf16 %v785, %v784
  %v788 = vsel %vm79, %v786, 0
  %790 = vmatpush.bf16.msra.mxu0 0
  %791 = vmatpush.bf16.msra.mxu0 0
  %792 = vmatpush.bf16.msra.mxu0 0
  %793 = vmatpush.bf16.msra.mxu0 0
  %794 = vmatpush.bf16.msra.mxu0 0
  %795 = vmatpush.bf16.msra.mxu0 0
  %796 = vmatpush.bf16.msra.mxu0 %v146
  %797 = vmatpush.bf16.msra.mxu0 %v145
  %798 = vmatmul.bf16.gmra.mxu0 %v788
  %v799 = vpop.f32.mrf.mxu0
  %v800 = vadd.f32 %v135, %v799
  %v801 = vpop.f32.mrf.mxu0
  %v802 = vadd.f32 %v135, %v801
  %803 = vdwg.mxu0
  %v804 = vmax.f32 %v800, 0.0
  %v805 = vmax.f32 %v802, 0.0
  %v806 = vpack.c.bf16 %v805, %v804
  %v808 = vsel %vm79, %v806, 0
  %810 = vmatpush.bf16.msra.mxu0 0
  %811 = vmatpush.bf16.msra.mxu0 0
  %812 = vmatpush.bf16.msra.mxu0 0
  %813 = vmatpush.bf16.msra.mxu0 0
  %814 = vmatpush.bf16.msra.mxu0 0
  %815 = vmatpush.bf16.msra.mxu0 0
  %816 = vmatpush.bf16.msra.mxu0 %v181
  %817 = vmatpush.bf16.msra.mxu0 %v180
  %818 = vmatmul.bf16.gmra.mxu0 %v808
  %v819 = vpop.f32.mrf.mxu0
  %v820 = vadd.f32 %v170, %v819
  %v821 = vpop.f32.mrf.mxu0
  %v822 = vadd.f32 %v170, %v821
  %823 = vdwg.mxu0
  %v824 = vmax.f32 %v820, 0.0
  %v825 = vmax.f32 %v822, 0.0
  %v826 = vpack.c.bf16 %v825, %v824
  %s827 = scalar_lea.vmem %s9, 96
  %v828 = vld [vmem:[%s827] sm:$0xf]
  %v829 = vld [vmem:[%s827 + $0x4] sm:$0xf]
  %v830 = vld [vmem:[%s827 + $0x8] sm:$0xf]
  %v831 = vld [vmem:[%s827 + $0xc] sm:$0xf]
  %v836 = vunpack.c.l.b16 %v828
  %v837 = vunpack.c.l.b16 %v829
  %v838 = vunpack.c.l.b16 %v830
  %v839 = vunpack.c.l.b16 %v831
  %v840 = vpack.c.b16 %v837, %v836
  %v841 = vpack.c.b16 %v839, %v838
  %v845 = vsel %vm79, %v826, 0
  %847 = vmatpush.bf16.msra.mxu0 0
  %848 = vmatpush.bf16.msra.mxu0 0
  %849 = vmatpush.bf16.msra.mxu0 0
  %850 = vmatpush.bf16.msra.mxu0 0
  %851 = vmatpush.bf16.msra.mxu0 0
  %852 = vmatpush.bf16.msra.mxu0 0
  %853 = vmatpush.bf16.msra.mxu0 %v841
  %854 = vmatpush.bf16.msra.mxu0 %v840
  %855 = vmatmul.bf16.gmra.mxu0 %v845
  %v856 = vpop.f32.mrf.mxu0
  %v857 = vadd.f32 0.0, %v856
  %v858 = vpop.f32.mrf.mxu0
  %v859 = vadd.f32 0.0, %v858
  %860 = vdwg.mxu0
  %v861 = vadd.f32 %v757, %v857
  %v862 = vadd.f32 %v758, %v859
  %v863 = vlaneseq
  %v864 = vand.u32 %v863, 127
  %v865 = vsub.f32 0.0, %v861
  %v866 = vsub.f32 0.0, %v862
  %v867 = vmul.f32 %v865, 1.442695
  %v868 = vpow.pop %v867
  %v869 = vmul.f32 %v866, 1.442695
  %v870 = vpow.pop %v869
  %v871 = vadd.f32 %v868, 1.0
  %v872 = vadd.f32 %v870, 1.0
  %v873 = vrcp.pop %v871
  %v874 = vmul.f32 %v871, %v873
  %v875 = vsub.f32 1.0, %v874
  %v876 = vmul.f32 %v873, %v875
  %v877 = vadd.f32 %v873, %v876
  %vm878 = vweird.f32 %v871
  %vm879 = vweird.f32 %v873
  %vm880 = vmor %vm878, %vm879
  %v881 = vsel %vm880, %v873, %v877
  %v882 = vand.u32 2147483647, %v871
  %vm883 = vcmp.eq.f32.partialorder %v882, 8.507059e+37
  %v884 = vand.u32 %v871, 2147483648
  %v885 = vor.u32 1.1754944e-38, %v884
  %v886 = vsel %vm883, %v885, %v881
  %v887 = vmul.f32 1.0, %v886
  %v888 = vrcp.pop %v872
  %v889 = vmul.f32 %v872, %v888
  %v890 = vsub.f32 1.0, %v889
  %v891 = vmul.f32 %v888, %v890
  %v892 = vadd.f32 %v888, %v891
  %vm893 = vweird.f32 %v872
  %vm894 = vweird.f32 %v888
  %vm895 = vmor %vm893, %vm894
  %v896 = vsel %vm895, %v888, %v892
  %v897 = vand.u32 2147483647, %v872
  %vm898 = vcmp.eq.f32.partialorder %v897, 8.507059e+37
  %v899 = vand.u32 %v872, 2147483648
  %v900 = vor.u32 1.1754944e-38, %v899
  %v901 = vsel %vm898, %v900, %v896
  %v902 = vmul.f32 1.0, %v901
  %vm903 = vcmp.lt.s32.totalorder %v864, 12
  %v904 = vsel %vm903, %v887, %v861
  %v905 = vsel %vm903, %v902, %v862
  %v906 = vpack.c.bf16 %v904, %v904
  %v907 = vpack.c.bf16 %v905, %v905
  %908 = vst [vmem:[%s11] sm:$0xf] %v906
  %909 = vst [vmem:[%s11 + $0x4] sm:$0xf] %v907
  // Predicated region
  $region46: #{plan_model_forward.1} parent=0 // pred_check
    _
  $region47: #{plan_model_forward.1} parent=0 // pred_check_branch
    %911 = sbr.rel (0) target = $region49
  $region48: #{plan_model_forward.1} parent=0 // pred_region
    _
  $region49: #{plan_model_forward.1} parent=0 // pred_fallthru
    _
  // Predicated region
  $region50: #{plan_model_forward.1} parent=0 // pred_check
    _
  $region51: #{plan_model_forward.1} parent=0 // pred_check_branch
    %913 = sbr.rel (0) target = $region53
  $region52: #{plan_model_forward.1} parent=0 // pred_region
    _
  $region53: #{plan_model_forward.1} parent=0 // pred_fallthru
    _

</llo_original>
